<compile_context>
chip_gen: v6e
topology: v6e:2x2x1
jax: 0.10.0
libtpu: 0.0.40
codegen_flags: <defaults>
</compile_context>

<pallas_src>
import functools
import math

import jax
import jax.numpy as jnp
from jax.experimental import pallas as pl
from jax.experimental.pallas import tpu as pltpu


def _round_up(n, m):
    return ((n + m - 1) // m) * m


def _choose_tb(B, max_tb=512):
    """Batch tile: 8-aligned, <= max_tb.  Minimize padded rows first, then
    prefer >= 2 grid steps (v7x has 2 TensorCores), then the largest tile
    (per-grid-step overhead ~0.35us)."""
    cap = min(max_tb, _round_up(B, 8))
    best_key, best_tb = None, 8
    for tb in range(8, cap + 1, 8):
        bp = _round_up(B, tb)
        steps = bp // tb
        key = (bp - B, 0 if steps >= 2 else 1, -tb)
        if best_key is None or key < best_key:
            best_key, best_tb = key, tb
    return best_tb


# --------------------------------------------------------------------------
# Kernel: one batch tile per grid step.  Single fused matmul.
#   x_ref : [TB, D]    f32/bf16   (batch tile, true feature width)
#   w_ref : [D,  N]    f32/bf16   (fused weight  [We^T | (We^T - I) @ Wh])
#   b_ref : [1,  N]    f32        (fused bias    [be   | be @ Wh + bh   ])
#   o_ref : [TB, N]    f32        ([y_emb | y_type | y_item | y_level])
# --------------------------------------------------------------------------
def evonet_kernel(x_ref, w_ref, b_ref, o_ref):
    x = x_ref[...].astype(w_ref.dtype)            # no-op when dtypes match
    o_ref[...] = jnp.dot(x, w_ref[...],
                         preferred_element_type=jnp.float32) + b_ref[...]


# --------------------------------------------------------------------------
# One-time parameter preparation (hoisted out of the per-call path).
# All fusion arithmetic is done in f32; weights are cast to compute_dtype last.
# --------------------------------------------------------------------------
def prepare_params(params, compute_dtype=jnp.float32):
    W_emb = jnp.asarray(params["W_emb"], jnp.float32)      # [D, D] (out, in)
    b_emb = jnp.asarray(params["b_emb"], jnp.float32)      # [D]
    W_type = jnp.asarray(params["W_type"], jnp.float32)    # [n_types, D]
    b_type = jnp.asarray(params["b_type"], jnp.float32)
    W_item = jnp.asarray(params["W_item"], jnp.float32)    # [n_items, D]
    b_item = jnp.asarray(params["b_item"], jnp.float32)
    W_level = jnp.asarray(params["W_level"], jnp.float32)  # [1, D]
    b_level = jnp.asarray(params["b_level"], jnp.float32)

    D_out, D_in = W_emb.shape
    if D_in != D_out:
        raise ValueError("EvoNet requires input_dim == output_dim (y_emb - x).")
    D = D_in
    n_types, n_items = W_type.shape[0], W_item.shape[0]
    H = n_types + n_items + 1
    N = D + H

    we_t = W_emb.T                                               # [D, D]
    wh = jnp.concatenate([W_type.T, W_item.T, W_level.T], 1)     # [D, H]
    bh = jnp.concatenate([b_type, b_item, b_level])              # [H]

    # Fold the residual (y_emb - x) into the head weights.
    w_heads = (we_t - jnp.eye(D, dtype=jnp.float32)) @ wh        # [D, H]
    b_heads = b_emb @ wh + bh                                    # [H]

    w_big = jnp.concatenate([we_t, w_heads], 1).astype(compute_dtype)  # [D, N]
    b_big = jnp.concatenate([b_emb, b_heads])[None, :]                 # [1, N] f32

    meta = {"D": D, "H": H, "N": N, "n_types": n_types, "n_items": n_items}
    return (w_big, b_big), meta


# --------------------------------------------------------------------------
# Forward pass (wrap in jax.jit so the tiny batch-pad / slices fuse).
# --------------------------------------------------------------------------
def evonet_forward(x, prepped, meta, tb=None):
    w_big, b_big = prepped
    B, D = x.shape
    N = meta["N"]
    assert D == meta["D"]

    TB = tb if tb is not None else _choose_tb(B)
    Bp = _round_up(B, TB)

    # Batch-only padding (no lane padding), and only when actually needed.
    if Bp != B:
        xp = jnp.zeros((Bp, D), x.dtype).at[:B].set(x)
    else:
        xp = x
    # bf16 path: feed x in bf16 too (halves the dominant HBM stream); the
    # kernel accumulates in f32 either way.
    xp = xp.astype(w_big.dtype)

    row_map = lambda i: (i, 0)      # batch-tiled operands
    const_map = lambda i: (0, 0)    # weights / bias stay VMEM-resident
    # NOTE: for large D on v7x (64 MiB VMEM), add pipeline_mode=pl.Buffered(1)
    # on the weight spec and/or vmem_limit_bytes; unnecessary at these sizes.
    out = pl.pallas_call(
        evonet_kernel,
        out_shape=jax.ShapeDtypeStruct((Bp, N), jnp.float32),
        grid=(Bp // TB,),
        in_specs=[
            pl.BlockSpec((TB, D), row_map),     # x tile
            pl.BlockSpec((D, N), const_map),    # fused weight
            pl.BlockSpec((1, N), const_map),    # fused bias
        ],
        out_specs=pl.BlockSpec((TB, N), row_map),
        compiler_params=pltpu.CompilerParams(
            dimension_semantics=("parallel",)),
    )(xp, w_big, b_big)

    nt, ni = meta["n_types"], meta["n_items"]
    y_emb = out[:B, :D]
    y_type = out[:B, D:D + nt]
    y_item = out[:B, D + nt:D + nt + ni]
    y_level = out[:B, D + nt + ni:D + nt + ni + 1]
    return y_emb, y_type, y_item, y_level


# --------------------------------------------------------------------------
# Init + pure-JAX reference (PyTorch nn.Linear convention).
# --------------------------------------------------------------------------
def init_params(key, input_dim, output_dim, n_evo_types, n_evo_items):
    keys = jax.random.split(key, 8)

    def lin(kw, kb, fan_in, fan_out):
        bound = 1.0 / math.sqrt(fan_in)
        W = jax.random.uniform(kw, (fan_out, fan_in), jnp.float32, -bound, bound)
        b = jax.random.uniform(kb, (fan_out,), jnp.float32, -bound, bound)
        return W, b

    W_emb, b_emb = lin(keys[0], keys[1], input_dim, output_dim)
    W_type, b_type = lin(keys[2], keys[3], output_dim, n_evo_types)
    W_item, b_item = lin(keys[4], keys[5], output_dim, n_evo_items)
    W_level, b_level = lin(keys[6], keys[7], output_dim, 1)

    return {
        "W_emb": W_emb, "b_emb": b_emb,
        "W_type": W_type, "b_type": b_type,
        "W_item": W_item, "b_item": b_item,
        "W_level": W_level, "b_level": b_level,
    }


def evonet_reference(x, params):
    y_emb = x @ params["W_emb"].T + params["b_emb"]
    d = y_emb - x
    y_type = d @ params["W_type"].T + params["b_type"]
    y_item = d @ params["W_item"].T + params["b_item"]
    y_level = d @ params["W_level"].T + params["b_level"]
    return y_emb, y_type, y_item, y_level


if __name__ == "__main__":
    # y_emb - x requires input_dim == output_dim.
    batch = 8
    input_dim = output_dim = 32
    n_evo_types = 4
    n_evo_items = 6

    root = jax.random.PRNGKey(0)
    kx, kp = jax.random.split(root)

    x = jax.random.normal(kx, (batch, input_dim), dtype=jnp.float32)
    params = init_params(kp, input_dim, output_dim, n_evo_types, n_evo_items)
    refs = evonet_reference(x, params)

    # ---- f32 fused-weight path: tight-tolerance check vs. reference. ----
    # (Algebraic fusion changes f32 rounding order slightly, so 1e-4 not 1e-5.)
    prepped32, meta32 = prepare_params(params, jnp.float32)
    fwd32 = jax.jit(functools.partial(evonet_forward, meta=meta32))
    outs32 = jax.block_until_ready(fwd32(x, prepped32))
    for o, r in zip(outs32, refs):
        assert o.shape == r.shape and o.dtype == r.dtype
        if not jnp.allclose(o, r, atol=1e-4, rtol=1e-4):
            raise AssertionError("Pallas f32 output mismatch vs reference")

    # ---- bf16 weight/x path (f32 accumulation): loose smoke check. ----
    prepped16, meta16 = prepare_params(params, jnp.bfloat16)
    fwd16 = jax.jit(functools.partial(evonet_forward, meta=meta16))
    outs16 = jax.block_until_ready(fwd16(x, prepped16))
    for o, r in zip(outs16, refs):
        assert o.shape == r.shape
        scale = float(jnp.max(jnp.abs(r))) + 1e-6
        rel_err = float(jnp.max(jnp.abs(o.astype(jnp.float32) - r))) / scale
        if rel_err > 0.12:
            raise AssertionError(
                f"Pallas bf16 output too far from reference (rel_err={rel_err})")

    print("KERNEL_OK")
</pallas_src>

<mosaic_0001>
module attributes {stable_mosaic.version = 11 : i64} {
  func.func @evonet_kernel(%arg0: i32, %arg1: memref<8x32xf32, #tpu.memory_space<vmem>>, %arg2: memref<32x43xf32, #tpu.memory_space<vmem>>, %arg3: memref<1x43xf32, #tpu.memory_space<vmem>>, %arg4: memref<8x43xf32, #tpu.memory_space<vmem>>) attributes {dimension_semantics = [#tpu.dimension_semantics<parallel>], iteration_bounds = array<i64: 1>, scalar_prefetch = 0 : i64, scratch_operands = 0 : i64, tpu.core_type = #tpu.core_type<tc>, window_params = [{transform_indices = @transform_0, window_bounds = array<i64: 8, 32>}, {pipeline_mode = #tpu.pipeline_mode<synchronous>, transform_indices = @transform_1, window_bounds = array<i64: 32, 43>}, {pipeline_mode = #tpu.pipeline_mode<synchronous>, transform_indices = @transform_2, window_bounds = array<i64: 1, 43>}, {transform_indices = @transform_3, window_bounds = array<i64: 8, 43>}]} {
    %c0 = arith.constant 0 : index
    %c0_0 = arith.constant 0 : index
    %0 = vector.load %arg1[%c0, %c0_0] : memref<8x32xf32, #tpu.memory_space<vmem>>, vector<8x32xf32>
    %c0_1 = arith.constant 0 : index
    %c0_2 = arith.constant 0 : index
    %1 = vector.load %arg2[%c0_1, %c0_2] : memref<32x43xf32, #tpu.memory_space<vmem>>, vector<32x43xf32>
    %cst = arith.constant dense<0.000000e+00> : vector<8x43xf32>
    %2 = tpu.matmul %0, %1, %cst {dimension_numbers = #tpu.dot_dimension_numbers<[1], [0], [0], [1], [0, 0, 1, 1], [], []>} : vector<8x32xf32>, vector<32x43xf32>, vector<8x43xf32> -> vector<8x43xf32>
    %c0_3 = arith.constant 0 : index
    %c0_4 = arith.constant 0 : index
    %3 = vector.load %arg3[%c0_3, %c0_4] : memref<1x43xf32, #tpu.memory_space<vmem>>, vector<1x43xf32>
    %4 = vector.broadcast %3 : vector<1x43xf32> to vector<8x43xf32>
    %5 = arith.addf %2, %4 : vector<8x43xf32>
    %c0_5 = arith.constant 0 : index
    %c0_6 = arith.constant 0 : index
    %6 = vector.load %arg4[%c0_5, %c0_6] : memref<8x43xf32, #tpu.memory_space<vmem>>, vector<8x43xf32>
    tpu.vector_store %arg4[%c0_5, %c0_6], %5 {strides = array<i32>} : memref<8x43xf32, #tpu.memory_space<vmem>>, vector<8x43xf32>,
    return
  }
  func.func @transform_0(%arg0: i32) -> (i32, i32) {
    %c0_i32 = arith.constant 0 : i32
    %c0_i32_0 = arith.constant 0 : i32
    return %arg0, %c0_i32 : i32, i32
  }
  func.func @transform_1(%arg0: i32) -> (i32, i32) {
    %c0_i32 = arith.constant 0 : i32
    %c0_i32_0 = arith.constant 0 : i32
    %c0_i32_1 = arith.constant 0 : i32
    return %c0_i32, %c0_i32_0 : i32, i32
  }
  func.func @transform_2(%arg0: i32) -> (i32, i32) {
    %c0_i32 = arith.constant 0 : i32
    %c0_i32_0 = arith.constant 0 : i32
    %c0_i32_1 = arith.constant 0 : i32
    return %c0_i32, %c0_i32_0 : i32, i32
  }
  func.func @transform_3(%arg0: i32) -> (i32, i32) {
    %c0_i32 = arith.constant 0 : i32
    %c0_i32_0 = arith.constant 0 : i32
    return %arg0, %c0_i32 : i32, i32
  }
}

</mosaic_0001>

<llo_original>
// kernel: evonet_forward.1
$region0: #{evonet_forward.1}
  #allocation0 [shape = 'u32[]', space=smem, size = 0x4, offset = 0x4, fixed_abs, tag = 'smem constant byte address 0x4 - core index']
  #allocation1 [shape = 'u32[144,128]{1,0:T(1,128)}', space=vmem, size = 0x12000, scoped, tag = 'internal scratch']
  %s0 = inlined_call_operand.hbm [shape: f32[8,32], index: 0, kind: input, shape index: {}]
  %s1 = inlined_call_operand.hbm [shape: f32[32,43], index: 1, kind: input, shape index: {}]
  %s2 = inlined_call_operand.vmem [shape: f32[1,43], index: 2, kind: input, shape index: {}]
  %s3 = inlined_call_operand.vmem [shape: f32[8,43], index: 3, kind: output, shape index: {}]
  %s4 = sld [smem:[#allocation0]]
  $region30: #{evonet_forward.1} parent=0
    _
  %s6 = ssub.s32 1, %s4
  %s7 = scalar_select 0, %s6, %s4
  $region1: #{evonet_forward.1} parent=0
    #allocation2 [shape = 'u8[4096]{0}', space=vmem, size = 0x1000, scoped, tag = 'input window, operand 0, single buffered']
    #allocation3 [shape = 's32[1]{0}', space=sflag, size = 0x4, scoped, tag = 'scoped memory for evonet_forward.1']
    #allocation4 [shape = 'u8[16384]{0}', space=vmem, size = 0x4000, scoped, tag = 'input window, operand 1, single buffered']
    #allocation5 [shape = 's32[1]{0}', space=sflag, size = 0x4, scoped, tag = 'scoped memory for evonet_forward.1']
    %8 = vsyncpa [#allocation3], 0
    %9 = vsyncpa [#allocation5], 0
    // Predicated region
    $region2: #{evonet_forward.1} parent=1 // pred_check
      _
    $region3: #{evonet_forward.1} parent=1 // pred_check_branch
      %11 = sbr.rel (0) target = $region5
    $region4: #{evonet_forward.1} parent=1 // pred_region
      %s13 = ssub.s32 128, 128
      %14 = vsyncadd [#allocation3], %s13
      %s16 = sshll.u32 [#allocation2], 4
      %s17 = int_to_ptr.vmem [resolvable:$true] %s16
      %19 = dma.hbm_to_vmem [thread:$0]  %s0, 128, %s17, [#allocation3]
    $region5: #{evonet_forward.1} parent=1 // pred_fallthru
      _
    // Predicated region
    $region6: #{evonet_forward.1} parent=1 // pred_check
      _
    $region7: #{evonet_forward.1} parent=1 // pred_check_branch
      %21 = sbr.rel (0) target = $region9
    $region8: #{evonet_forward.1} parent=1 // pred_region
      %s23 = ssub.s32 512, 512
      %24 = vsyncadd [#allocation5], %s23
      %s25 = sshll.u32 [#allocation4], 4
      %s26 = int_to_ptr.vmem [resolvable:$true] %s25
      %31 = dma.hbm_to_vmem [thread:$0]  %s1, 512, %s26, [#allocation5], 128, 128, 8
    $region9: #{evonet_forward.1} parent=1 // pred_fallthru
      _
    // Predicated region
    $region10: #{evonet_forward.1} parent=1 // pred_check
      _
    $region11: #{evonet_forward.1} parent=1 // pred_check_branch
      %33 = sbr.rel (0) target = $region13
    $region12: #{evonet_forward.1} parent=1 // pred_region
      _
    $region13: #{evonet_forward.1} parent=1 // pred_fallthru
      _
    // Predicated region
    $region14: #{evonet_forward.1} parent=1 // pred_check
      _
    $region15: #{evonet_forward.1} parent=1 // pred_check_branch
      %35 = sbr.rel (0) target = $region17
    $region16: #{evonet_forward.1} parent=1 // pred_region
      %36 = dma.done [#allocation3], 128
    $region17: #{evonet_forward.1} parent=1 // pred_fallthru
      _
    // Predicated region
    $region18: #{evonet_forward.1} parent=1 // pred_check
      _
    $region19: #{evonet_forward.1} parent=1 // pred_check_branch
      %38 = sbr.rel (0) target = $region21
    $region20: #{evonet_forward.1} parent=1 // pred_region
      %39 = dma.done [#allocation5], 512
    $region21: #{evonet_forward.1} parent=1 // pred_fallthru
      _
    %v40 = vld [vmem:[#allocation2] sm:$0xff]
    %v41 = vld [vmem:[#allocation4] sm:$0xff]
    %v42 = vld [vmem:[#allocation4 + $0x8] sm:$0xff]
    %v43 = vld [vmem:[#allocation4 + $0x10] sm:$0xff]
    %v44 = vld [vmem:[#allocation4 + $0x18] sm:$0xff]
    %v45 = vld [vmem:[%s2] sm:$0x1]
    %v47 = vlaneseq
    %v48 = vshrl.u32 %v47, 7
    %v49 = vsub.s32 0, %v48
    %v50 = vrot.slane %v45, %v49
    %vm52 = vcmask 261120
    %v54 = vsel %vm52, %v40, 0
    %56 = vmatprep.subr.mxu0 0.0
    %57 = vmatpush1.msra.mxu0 0.0
    %58 = vmatprep.subr.mxu0 0.0
    %59 = vmatpush1.msra.mxu0 0.0
    %60 = vmatprep.subr.mxu0 0.0
    %61 = vmatpush1.msra.mxu0 0.0
    %62 = vmatprep.subr.mxu0 0.0
    %63 = vmatpush1.msra.mxu0 0.0
    %64 = vmatprep.subr.mxu0 0.0
    %65 = vmatpush1.msra.mxu0 0.0
    %66 = vmatprep.subr.mxu0 0.0
    %67 = vmatpush1.msra.mxu0 0.0
    %68 = vmatprep.subr.mxu0 0.0
    %69 = vmatpush1.msra.mxu0 0.0
    %70 = vmatprep.subr.mxu0 0.0
    %71 = vmatpush1.msra.mxu0 0.0
    %72 = vmatprep.subr.mxu0 0.0
    %73 = vmatpush1.msra.mxu0 0.0
    %74 = vmatprep.subr.mxu0 0.0
    %75 = vmatpush1.msra.mxu0 0.0
    %76 = vmatprep.subr.mxu0 0.0
    %77 = vmatpush1.msra.mxu0 0.0
    %78 = vmatprep.subr.mxu0 0.0
    %79 = vmatpush1.msra.mxu0 0.0
    %80 = vmatprep.subr.mxu0 0.0
    %81 = vmatpush1.msra.mxu0 %v44
    %82 = vmatprep.subr.mxu0 0.0
    %83 = vmatpush1.msra.mxu0 %v43
    %84 = vmatprep.subr.mxu0 0.0
    %85 = vmatpush1.msra.mxu0 %v42
    %86 = vmatprep.subr.mxu0 0.0
    %87 = vmatpush1.msra.mxu0 %v41
    %88 = vmatprep.subr.mxu0 0.0
    %89 = vmatpush2.msra.mxu0 0.0
    %90 = vmatprep.subr.mxu0 0.0
    %91 = vmatpush2.msra.mxu0 0.0
    %92 = vmatprep.subr.mxu0 0.0
    %93 = vmatpush2.msra.mxu0 0.0
    %94 = vmatprep.subr.mxu0 0.0
    %95 = vmatpush2.msra.mxu0 0.0
    %96 = vmatprep.subr.mxu0 0.0
    %97 = vmatpush2.msra.mxu0 0.0
    %98 = vmatprep.subr.mxu0 0.0
    %99 = vmatpush2.msra.mxu0 0.0
    %100 = vmatprep.subr.mxu0 0.0
    %101 = vmatpush2.msra.mxu0 0.0
    %102 = vmatprep.subr.mxu0 0.0
    %103 = vmatpush2.msra.mxu0 0.0
    %104 = vmatprep.subr.mxu0 0.0
    %105 = vmatpush2.msra.mxu0 0.0
    %106 = vmatprep.subr.mxu0 0.0
    %107 = vmatpush2.msra.mxu0 0.0
    %108 = vmatprep.subr.mxu0 0.0
    %109 = vmatpush2.msra.mxu0 0.0
    %110 = vmatprep.subr.mxu0 0.0
    %111 = vmatpush2.msra.mxu0 0.0
    %112 = vmatprep.subr.mxu0 0.0
    %113 = vmatpush2.msra.mxu0 0.0
    %114 = vmatprep.subr.mxu0 0.0
    %115 = vmatpush2.msra.mxu0 0.0
    %116 = vmatprep.subr.mxu0 0.0
    %117 = vmatpush2.msra.mxu0 0.0
    %118 = vmatprep.subr.mxu0 0.0
    %119 = vmatpush2.msra.mxu0 0.0
    %120 = vmatprep.mubr.f32.mxu0 0.0
    %121 = vmatmul.mubr.f32.gmra.mxu0 %v54
    %v122 = vpop.f32.mrf.mxu0
    %v123 = vadd.f32 %v50, %v122
    %v124 = vpop.f32.mrf.mxu0
    %125 = vdwg.mxu0
    %vm126 = vcmask 351232
    %127 = vst.msk [vmem:[%s3] sm:$0xff] %vm126, %v123
    // Predicated region
    $region22: #{evonet_forward.1} parent=1 // pred_check
      _
    $region23: #{evonet_forward.1} parent=1 // pred_check_branch
      %129 = sbr.rel (0) target = $region25
    $region24: #{evonet_forward.1} parent=1 // pred_region
      _
    $region25: #{evonet_forward.1} parent=1 // pred_fallthru
      _
    // Predicated region
    $region26: #{evonet_forward.1} parent=1 // pred_check
      _
    $region27: #{evonet_forward.1} parent=1 // pred_check_branch
      %131 = sbr.rel (0) target = $region29
    $region28: #{evonet_forward.1} parent=1 // pred_region
      _
    $region29: #{evonet_forward.1} parent=1 // pred_fallthru
      _
    %132 = vsyncpa [#allocation3], 1
    %133 = vsyncpa [#allocation5], 1

</llo_original>
